<compile_context>
chip_gen: v6e
topology: v6e:2x2x1
jax: 0.10.0
libtpu: 0.0.40
codegen_flags: <defaults>
</compile_context>

<pallas_src>
import functools

import jax
import jax.numpy as jnp
import numpy as np
from jax.experimental import pallas as pl
from jax.experimental.pallas import tpu as pltpu


def _resize_kernel(x_ref, s_ref, o_ref):
    # x_ref: (TILE_M, H*W)        flattened input rows (one row = one (b, c))
    # s_ref: (H*W, H_out*W_out)   one-hot nearest-neighbor selection matrix
    # o_ref: (TILE_M, H_out*W_out) lane-dense flattened output
    o_ref[...] = jnp.dot(
        x_ref[...], s_ref[...], preferred_element_type=jnp.float32
    ).astype(o_ref.dtype)


def _nearest_indices(in_size: int, out_size: int) -> np.ndarray:
    # PyTorch F.interpolate(mode='nearest') index rule: src = floor(dst * in/out)
    return np.floor(
        np.arange(out_size, dtype=np.float64) * in_size / out_size
    ).astype(np.int64)


def _selection_matrix(H, W, H_out, W_out, dtype):
    """(H*W, H_out*W_out) one-hot gather matrix (0/1 exact in bf16/f32)."""
    h_idx = _nearest_indices(H, H_out)
    w_idx = _nearest_indices(W, W_out)
    sh_t = (np.arange(H)[:, None] == h_idx[None, :]).astype(np.float32)  # (H, H_out)
    sw = (np.arange(W)[:, None] == w_idx[None, :]).astype(np.float32)    # (W, W_out)
    s = np.kron(sh_t, sw)  # [h*W+w, ho*W_out+wo] = [h==h_idx[ho]] * [w==w_idx[wo]]
    return jnp.asarray(s, dtype=dtype)


def _round_up(x: int, m: int) -> int:
    return ((x + m - 1) // m) * m


def _pick_tile_m(M: int, HW: int, HWo: int, itemsize: int) -> int:
    """Row-tile size: multiple of 8, fits a ~48 MiB VMEM budget (v7x-safe)."""
    if M <= 8:
        return M  # single block equal to full row dim
    s_bytes = HW * HWo * itemsize
    budget = 48 * 1024 * 1024
    m_pad = _round_up(M, 8)
    tm = 8
    for cand in (1024, 512, 256, 128, 64, 32, 16, 8):
        # 2x double-buffered in/out blocks + (double-buffered) resident S.
        need = 2 * cand * (HW + HWo) * itemsize + 2 * s_bytes
        if cand <= m_pad and need <= budget:
            tm = cand
            break
    # Prefer >=2 grid steps so v7x's two TensorCores both get work.
    while tm > 8 and pl.cdiv(M, tm) < 2:
        tm //= 2
    return tm


@functools.partial(jax.jit, static_argnames=("size",))
def feature_resize(x: jax.Array, size=(10, 25)) -> jax.Array:
    """Pallas implementation of FeatureResize.forward.

    Args:
        x: (B, C, H, W) array.
        size: target (H', W').
    Returns:
        (B, C, H'*W') array (same dtype as x).
    """
    B, C, H, W = x.shape
    H_out, W_out = size
    HW, HWo = H * W, H_out * W_out
    M = B * C

    orig_dtype = x.dtype
    if not jnp.issubdtype(orig_dtype, jnp.floating):
        # One-hot gather through the (float) MXU; exact for |x| < 2^24.
        x = x.astype(jnp.float32)
    compute_dtype = x.dtype
    itemsize = jnp.dtype(compute_dtype).itemsize

    # Selection matrix in the input dtype (hits native bf16 MXU path for bf16 x).
    s = _selection_matrix(H, W, H_out, W_out, compute_dtype)

    # Free reshape (row-major contiguous): (B, C, H, W) -> (B*C, H*W).
    x2d = x.reshape(M, HW)

    tile_m = _pick_tile_m(M, HW, HWo, itemsize)
    grid = (pl.cdiv(M, tile_m),)

    out2d = pl.pallas_call(
        _resize_kernel,
        out_shape=jax.ShapeDtypeStruct((M, HWo), compute_dtype),
        grid_spec=pltpu.PrefetchScalarGridSpec(
            num_scalar_prefetch=0,
            grid=grid,
            in_specs=[
                pl.BlockSpec((tile_m, HW), lambda i: (i, 0)),
                pl.BlockSpec((HW, HWo), lambda i: (0, 0)),  # resident, fetched once
            ],
            out_specs=pl.BlockSpec((tile_m, HWo), lambda i: (i, 0)),
        ),
        compiler_params=pltpu.CompilerParams(
            dimension_semantics=("parallel",),
            vmem_limit_bytes=48 * 1024 * 1024,
        ),
    )(x2d, s)

    # Free reshape: (B*C, H'*W') -> (B, C, H'*W')  (flatten(2) already fused).
    out = out2d.reshape(B, C, HWo)
    if out.dtype != orig_dtype:
        out = out.astype(orig_dtype)
    return out


if __name__ == "__main__":
    key = jax.random.PRNGKey(0)
    B, C, H, W = 2, 4, 16, 16
    size = (10, 25)

    x = jax.random.normal(key, (B, C, H, W), dtype=jnp.float32)

    out = feature_resize(x, size=size)
    out = jax.block_until_ready(out)

    # Reference: plain numpy nearest-neighbor gather (PyTorch floor(dst*in/out) rule).
    x_np = np.asarray(x)
    h_idx = _nearest_indices(H, size[0])
    w_idx = _nearest_indices(W, size[1])
    ref = x_np[:, :, h_idx, :][:, :, :, w_idx].reshape(B, C, -1)

    assert out.shape == (B, C, size[0] * size[1]), out.shape
    np.testing.assert_allclose(np.asarray(out), ref, rtol=1e-6, atol=1e-6)

    print("KERNEL_OK")
</pallas_src>

<mosaic_0001>
module attributes {stable_mosaic.version = 11 : i64} {
  func.func @_resize_kernel(%arg0: i32, %arg1: memref<8x256xf32, #tpu.memory_space<vmem>>, %arg2: memref<256x250xf32, #tpu.memory_space<vmem>>, %arg3: memref<8x250xf32, #tpu.memory_space<vmem>>) attributes {dimension_semantics = [#tpu.dimension_semantics<parallel>], iteration_bounds = array<i64: 1>, scalar_prefetch = 0 : i64, scratch_operands = 0 : i64, tpu.core_type = #tpu.core_type<tc>, window_params = [{transform_indices = @transform_0, window_bounds = array<i64: 8, 256>}, {pipeline_mode = #tpu.pipeline_mode<synchronous>, transform_indices = @transform_1, window_bounds = array<i64: 256, 250>}, {transform_indices = @transform_2, window_bounds = array<i64: 8, 250>}]} {
    %c0 = arith.constant 0 : index
    %c0_0 = arith.constant 0 : index
    %0 = vector.load %arg1[%c0, %c0_0] : memref<8x256xf32, #tpu.memory_space<vmem>>, vector<8x256xf32>
    %c0_1 = arith.constant 0 : index
    %c0_2 = arith.constant 0 : index
    %1 = vector.load %arg2[%c0_1, %c0_2] : memref<256x250xf32, #tpu.memory_space<vmem>>, vector<256x250xf32>
    %cst = arith.constant dense<0.000000e+00> : vector<8x250xf32>
    %2 = tpu.matmul %0, %1, %cst {dimension_numbers = #tpu.dot_dimension_numbers<[1], [0], [0], [1], [0, 0, 1, 1], [], []>} : vector<8x256xf32>, vector<256x250xf32>, vector<8x250xf32> -> vector<8x250xf32>
    %c0_3 = arith.constant 0 : index
    %c0_4 = arith.constant 0 : index
    %3 = vector.load %arg3[%c0_3, %c0_4] : memref<8x250xf32, #tpu.memory_space<vmem>>, vector<8x250xf32>
    tpu.vector_store %arg3[%c0_3, %c0_4], %2 {strides = array<i32>} : memref<8x250xf32, #tpu.memory_space<vmem>>, vector<8x250xf32>,
    return
  }
  func.func @transform_0(%arg0: i32) -> (i32, i32) {
    %c0_i32 = arith.constant 0 : i32
    %c0_i32_0 = arith.constant 0 : i32
    return %arg0, %c0_i32 : i32, i32
  }
  func.func @transform_1(%arg0: i32) -> (i32, i32) {
    %c0_i32 = arith.constant 0 : i32
    %c0_i32_0 = arith.constant 0 : i32
    %c0_i32_1 = arith.constant 0 : i32
    return %c0_i32, %c0_i32_0 : i32, i32
  }
  func.func @transform_2(%arg0: i32) -> (i32, i32) {
    %c0_i32 = arith.constant 0 : i32
    %c0_i32_0 = arith.constant 0 : i32
    return %arg0, %c0_i32 : i32, i32
  }
}

</mosaic_0001>

<llo_original>
// kernel: feature_resize.1
$region0: #{feature_resize.1}
  #allocation0 [shape = 'u32[]', space=smem, size = 0x4, offset = 0x4, fixed_abs, tag = 'smem constant byte address 0x4 - core index']
  #allocation1 [shape = 'u32[144,128]{1,0:T(1,128)}', space=vmem, size = 0x12000, scoped, tag = 'internal scratch']
  %s0 = inlined_call_operand.vmem [shape: f32[8,256], index: 0, kind: input, shape index: {}]
  %s1 = inlined_call_operand.hbm [shape: f32[256,250], index: 1, kind: input, shape index: {}]
  %s2 = inlined_call_operand.vmem [shape: f32[8,250], index: 2, kind: output, shape index: {}]
  %s3 = sld [smem:[#allocation0]]
  $region22: #{feature_resize.1} parent=0
    _
  %s5 = ssub.s32 1, %s3
  %s6 = scalar_select 0, %s5, %s3
  $region1: #{feature_resize.1} parent=0
    #allocation2 [shape = 'u8[262144]{0}', space=vmem, size = 0x40000, scoped, tag = 'input window, operand 1, single buffered']
    #allocation3 [shape = 's32[1]{0}', space=sflag, size = 0x4, scoped, tag = 'scoped memory for feature_resize.1']
    %7 = vsyncpa [#allocation3], 0
    // Predicated region
    $region2: #{feature_resize.1} parent=1 // pred_check
      _
    $region3: #{feature_resize.1} parent=1 // pred_check_branch
      %9 = sbr.rel (0) target = $region5
    $region4: #{feature_resize.1} parent=1 // pred_region
      _
    $region5: #{feature_resize.1} parent=1 // pred_fallthru
      _
    // Predicated region
    $region6: #{feature_resize.1} parent=1 // pred_check
      _
    $region7: #{feature_resize.1} parent=1 // pred_check_branch
      %11 = sbr.rel (0) target = $region9
    $region8: #{feature_resize.1} parent=1 // pred_region
      %s13 = ssub.s32 8192, 8192
      %14 = vsyncadd [#allocation3], %s13
      %s15 = sshll.u32 [#allocation2], 4
      %s16 = int_to_ptr.vmem [resolvable:$true] %s15
      %21 = dma.hbm_to_vmem [thread:$0]  %s1, 8192, %s16, [#allocation3], 256, 256, 16
    $region9: #{feature_resize.1} parent=1 // pred_fallthru
      _
    // Predicated region
    $region10: #{feature_resize.1} parent=1 // pred_check
      _
    $region11: #{feature_resize.1} parent=1 // pred_check_branch
      %23 = sbr.rel (0) target = $region13
    $region12: #{feature_resize.1} parent=1 // pred_region
      %24 = dma.done [#allocation3], 8192
    $region13: #{feature_resize.1} parent=1 // pred_fallthru
      _
    %v25 = vld [vmem:[%s0] sm:$0xff]
    %v26 = vld [vmem:[%s0 + $0x8] sm:$0xff]
    %v27 = vld [vmem:[#allocation2] sm:$0xff]
    %v28 = vld [vmem:[#allocation2 + $0x8] sm:$0xff]
    %v29 = vld [vmem:[#allocation2 + $0x10] sm:$0xff]
    %v30 = vld [vmem:[#allocation2 + $0x18] sm:$0xff]
    %v31 = vld [vmem:[#allocation2 + $0x20] sm:$0xff]
    %v32 = vld [vmem:[#allocation2 + $0x28] sm:$0xff]
    %v33 = vld [vmem:[#allocation2 + $0x30] sm:$0xff]
    %v34 = vld [vmem:[#allocation2 + $0x38] sm:$0xff]
    %v35 = vld [vmem:[#allocation2 + $0x40] sm:$0xff]
    %v36 = vld [vmem:[#allocation2 + $0x48] sm:$0xff]
    %v37 = vld [vmem:[#allocation2 + $0x50] sm:$0xff]
    %v38 = vld [vmem:[#allocation2 + $0x58] sm:$0xff]
    %v39 = vld [vmem:[#allocation2 + $0x60] sm:$0xff]
    %v40 = vld [vmem:[#allocation2 + $0x68] sm:$0xff]
    %v41 = vld [vmem:[#allocation2 + $0x70] sm:$0xff]
    %v42 = vld [vmem:[#allocation2 + $0x78] sm:$0xff]
    %v43 = vld [vmem:[#allocation2 + $0x80] sm:$0xff]
    %v44 = vld [vmem:[#allocation2 + $0x88] sm:$0xff]
    %v45 = vld [vmem:[#allocation2 + $0x90] sm:$0xff]
    %v46 = vld [vmem:[#allocation2 + $0x98] sm:$0xff]
    %v47 = vld [vmem:[#allocation2 + $0xa0] sm:$0xff]
    %v48 = vld [vmem:[#allocation2 + $0xa8] sm:$0xff]
    %v49 = vld [vmem:[#allocation2 + $0xb0] sm:$0xff]
    %v50 = vld [vmem:[#allocation2 + $0xb8] sm:$0xff]
    %v51 = vld [vmem:[#allocation2 + $0xc0] sm:$0xff]
    %v52 = vld [vmem:[#allocation2 + $0xc8] sm:$0xff]
    %v53 = vld [vmem:[#allocation2 + $0xd0] sm:$0xff]
    %v54 = vld [vmem:[#allocation2 + $0xd8] sm:$0xff]
    %v55 = vld [vmem:[#allocation2 + $0xe0] sm:$0xff]
    %v56 = vld [vmem:[#allocation2 + $0xe8] sm:$0xff]
    %v57 = vld [vmem:[#allocation2 + $0xf0] sm:$0xff]
    %v58 = vld [vmem:[#allocation2 + $0xf8] sm:$0xff]
    %v59 = vld [vmem:[#allocation2 + $0x100] sm:$0xff]
    %v60 = vld [vmem:[#allocation2 + $0x108] sm:$0xff]
    %v61 = vld [vmem:[#allocation2 + $0x110] sm:$0xff]
    %v62 = vld [vmem:[#allocation2 + $0x118] sm:$0xff]
    %v63 = vld [vmem:[#allocation2 + $0x120] sm:$0xff]
    %v64 = vld [vmem:[#allocation2 + $0x128] sm:$0xff]
    %v65 = vld [vmem:[#allocation2 + $0x130] sm:$0xff]
    %v66 = vld [vmem:[#allocation2 + $0x138] sm:$0xff]
    %v67 = vld [vmem:[#allocation2 + $0x140] sm:$0xff]
    %v68 = vld [vmem:[#allocation2 + $0x148] sm:$0xff]
    %v69 = vld [vmem:[#allocation2 + $0x150] sm:$0xff]
    %v70 = vld [vmem:[#allocation2 + $0x158] sm:$0xff]
    %v71 = vld [vmem:[#allocation2 + $0x160] sm:$0xff]
    %v72 = vld [vmem:[#allocation2 + $0x168] sm:$0xff]
    %v73 = vld [vmem:[#allocation2 + $0x170] sm:$0xff]
    %v74 = vld [vmem:[#allocation2 + $0x178] sm:$0xff]
    %v75 = vld [vmem:[#allocation2 + $0x180] sm:$0xff]
    %v76 = vld [vmem:[#allocation2 + $0x188] sm:$0xff]
    %v77 = vld [vmem:[#allocation2 + $0x190] sm:$0xff]
    %v78 = vld [vmem:[#allocation2 + $0x198] sm:$0xff]
    %v79 = vld [vmem:[#allocation2 + $0x1a0] sm:$0xff]
    %v80 = vld [vmem:[#allocation2 + $0x1a8] sm:$0xff]
    %v81 = vld [vmem:[#allocation2 + $0x1b0] sm:$0xff]
    %v82 = vld [vmem:[#allocation2 + $0x1b8] sm:$0xff]
    %v83 = vld [vmem:[#allocation2 + $0x1c0] sm:$0xff]
    %v84 = vld [vmem:[#allocation2 + $0x1c8] sm:$0xff]
    %v85 = vld [vmem:[#allocation2 + $0x1d0] sm:$0xff]
    %v86 = vld [vmem:[#allocation2 + $0x1d8] sm:$0xff]
    %v87 = vld [vmem:[#allocation2 + $0x1e0] sm:$0xff]
    %v88 = vld [vmem:[#allocation2 + $0x1e8] sm:$0xff]
    %v89 = vld [vmem:[#allocation2 + $0x1f0] sm:$0xff]
    %v90 = vld [vmem:[#allocation2 + $0x1f8] sm:$0xff]
    %91 = vmatprep.subr.mxu0 %v58
    %92 = vmatpush1.msra.mxu0 %v57
    %93 = vmatprep.subr.mxu0 %v56
    %94 = vmatpush1.msra.mxu0 %v55
    %95 = vmatprep.subr.mxu0 %v54
    %96 = vmatpush1.msra.mxu0 %v53
    %97 = vmatprep.subr.mxu0 %v52
    %98 = vmatpush1.msra.mxu0 %v51
    %99 = vmatprep.subr.mxu0 %v50
    %100 = vmatpush1.msra.mxu0 %v49
    %101 = vmatprep.subr.mxu0 %v48
    %102 = vmatpush1.msra.mxu0 %v47
    %103 = vmatprep.subr.mxu0 %v46
    %104 = vmatpush1.msra.mxu0 %v45
    %105 = vmatprep.subr.mxu0 %v44
    %106 = vmatpush1.msra.mxu0 %v43
    %107 = vmatprep.subr.mxu0 %v42
    %108 = vmatpush1.msra.mxu0 %v41
    %109 = vmatprep.subr.mxu0 %v40
    %110 = vmatpush1.msra.mxu0 %v39
    %111 = vmatprep.subr.mxu0 %v38
    %112 = vmatpush1.msra.mxu0 %v37
    %113 = vmatprep.subr.mxu0 %v36
    %114 = vmatpush1.msra.mxu0 %v35
    %115 = vmatprep.subr.mxu0 %v34
    %116 = vmatpush1.msra.mxu0 %v33
    %117 = vmatprep.subr.mxu0 %v32
    %118 = vmatpush1.msra.mxu0 %v31
    %119 = vmatprep.subr.mxu0 %v30
    %120 = vmatpush1.msra.mxu0 %v29
    %121 = vmatprep.subr.mxu0 %v28
    %122 = vmatpush1.msra.mxu0 %v27
    %123 = vmatprep.subr.mxu0 %v90
    %124 = vmatpush2.msra.mxu0 %v89
    %125 = vmatprep.subr.mxu0 %v88
    %126 = vmatpush2.msra.mxu0 %v87
    %127 = vmatprep.subr.mxu0 %v86
    %128 = vmatpush2.msra.mxu0 %v85
    %129 = vmatprep.subr.mxu0 %v84
    %130 = vmatpush2.msra.mxu0 %v83
    %131 = vmatprep.subr.mxu0 %v82
    %132 = vmatpush2.msra.mxu0 %v81
    %133 = vmatprep.subr.mxu0 %v80
    %134 = vmatpush2.msra.mxu0 %v79
    %135 = vmatprep.subr.mxu0 %v78
    %136 = vmatpush2.msra.mxu0 %v77
    %137 = vmatprep.subr.mxu0 %v76
    %138 = vmatpush2.msra.mxu0 %v75
    %139 = vmatprep.subr.mxu0 %v74
    %140 = vmatpush2.msra.mxu0 %v73
    %141 = vmatprep.subr.mxu0 %v72
    %142 = vmatpush2.msra.mxu0 %v71
    %143 = vmatprep.subr.mxu0 %v70
    %144 = vmatpush2.msra.mxu0 %v69
    %145 = vmatprep.subr.mxu0 %v68
    %146 = vmatpush2.msra.mxu0 %v67
    %147 = vmatprep.subr.mxu0 %v66
    %148 = vmatpush2.msra.mxu0 %v65
    %149 = vmatprep.subr.mxu0 %v64
    %150 = vmatpush2.msra.mxu0 %v63
    %151 = vmatprep.subr.mxu0 %v62
    %152 = vmatpush2.msra.mxu0 %v61
    %153 = vmatprep.subr.mxu0 %v60
    %154 = vmatpush2.msra.mxu0 %v59
    %155 = vmatprep.mubr.f32.mxu0 %v26
    %156 = vmatmul.mubr.f32.gmra.mxu0 %v25
    %v157 = vpop.f32.mrf.mxu0
    %v158 = vadd.f32 0.0, %v157
    %v159 = vpop.f32.mrf.mxu0
    %v160 = vadd.f32 0.0, %v159
    %161 = vdwg.mxu0
    %162 = vst [vmem:[%s2] sm:$0xff] %v158
    %vm163 = vcmask 998400
    %164 = vst.msk [vmem:[%s2 + $0x8] sm:$0xff] %vm163, %v160
    // Predicated region
    $region14: #{feature_resize.1} parent=1 // pred_check
      _
    $region15: #{feature_resize.1} parent=1 // pred_check_branch
      %166 = sbr.rel (0) target = $region17
    $region16: #{feature_resize.1} parent=1 // pred_region
      _
    $region17: #{feature_resize.1} parent=1 // pred_fallthru
      _
    // Predicated region
    $region18: #{feature_resize.1} parent=1 // pred_check
      _
    $region19: #{feature_resize.1} parent=1 // pred_check_branch
      %168 = sbr.rel (0) target = $region21
    $region20: #{feature_resize.1} parent=1 // pred_region
      _
    $region21: #{feature_resize.1} parent=1 // pred_fallthru
      _
    %169 = vsyncpa [#allocation3], 1

</llo_original>
